<compile_context>
chip_gen: v6e
topology: v6e:2x2x1
jax: 0.10.0
libtpu: 0.0.40
codegen_flags: <defaults>
</compile_context>

<pallas_src>
import jax
import jax.numpy as jnp
from jax.experimental import pallas as pl
from jax.experimental.pallas import tpu as pltpu


# ---------------------------------------------------------------------------
# Fused sincos: shared Cody-Waite range reduction (x = k*pi/2 + r, |r|<=pi/4)
# followed by the Cephes single-precision sin/cos polynomials and a quadrant
# select.  All ops are plain VPU (mul/sub/floor/select) — no EUP, no XLU.
# ---------------------------------------------------------------------------
_TWO_OVER_PI = 0.6366197723675814
_PIO2_HI = 1.5703125                    # exact in f32
_PIO2_MID = 4.837512969970703125e-4     # exact in f32
_PIO2_LO = 7.54978995489188216e-8
_SIN_C1 = -1.6666654611e-1
_SIN_C2 = 8.3321608736e-3
_SIN_C3 = -1.9515295891e-4
_COS_C1 = 4.166664568298827e-2
_COS_C2 = -1.388731625493765e-3
_COS_C3 = 2.443315711809948e-5


def _sincos(x):
    """Return (sin(x), cos(x)) for f32 x with one shared range reduction."""
    k = jnp.floor(x * _TWO_OVER_PI + 0.5)
    r = x - k * _PIO2_HI
    r = r - k * _PIO2_MID
    r = r - k * _PIO2_LO
    z = r * r
    s_poly = r + r * z * (_SIN_C1 + z * (_SIN_C2 + z * _SIN_C3))
    c_poly = 1.0 - 0.5 * z + z * z * (_COS_C1 + z * (_COS_C2 + z * _COS_C3))

    q = k.astype(jnp.int32) & 3
    swap = (q & 1) != 0                       # quadrants 1,3: sin<->cos
    sin_v = jnp.where(swap, c_poly, s_poly)
    cos_v = jnp.where(swap, s_poly, c_poly)
    sin_neg = (q & 2) != 0                    # quadrants 2,3
    cos_neg = ((q + 1) & 2) != 0              # quadrants 1,2
    sin_v = jnp.where(sin_neg, -sin_v, sin_v)
    cos_v = jnp.where(cos_neg, -cos_v, cos_v)
    return sin_v, cos_v


def _rope_kernel(pos_ref, invf_ref, cos_ref, sin_ref):
    # pos_ref:  (TR, 1)      int32   positions, sublane-major
    # invf_ref: (1, W)       f32     W == dim//2 (lane-aligned) or W == dim
    # cos_ref / sin_ref: (TR, dim)   output tiles in x.dtype
    width = invf_ref.shape[-1]
    dim = cos_ref.shape[-1]

    pos = pos_ref[...].astype(jnp.float32)     # free VPU cast
    freqs = pos * invf_ref[...]                # (TR, W) broadcast multiply (VPU)
    sin_v, cos_v = _sincos(freqs)              # fused, single range reduction

    if width == dim:
        # half < 128: inv_freq was pre-duplicated by the wrapper so we issue a
        # single unmasked full-width store per output (lane-dense out_spec).
        cos_ref[...] = cos_v.astype(cos_ref.dtype)
        sin_ref[...] = sin_v.astype(sin_ref.dtype)
    else:
        # half is a multiple of 128: transcendental work stays halved and the
        # two half-width stores are already unmasked / lane-aligned.
        half = width
        cos_half = cos_v.astype(cos_ref.dtype)
        sin_half = sin_v.astype(sin_ref.dtype)
        cos_ref[:, :half] = cos_half
        cos_ref[:, half:] = cos_half
        sin_ref[:, :half] = sin_half
        sin_ref[:, half:] = sin_half


def gemma_rotary_embedding(x, position_ids, dim, base=10000.0,
                           row_tile=2048, min_rows_for_kernel=256):
    """Pallas equivalent of GemmaRotaryEmbedding.forward.

    x:            (B, S, ...) array -- only its dtype is used (like PyTorch).
    position_ids: (B, S) integer array.
    Returns (cos, sin), each (B, S, dim) in x.dtype.
    """
    B, S = position_ids.shape
    half = dim // 2
    total = B * S
    out_dtype = x.dtype

    # Deterministic "parameter" (mirrors the PyTorch __init__ buffer).
    inv_freq = base ** (-jnp.arange(0, dim, 2, dtype=jnp.float32) / dim)  # (half,)

    # Decode-like sizes: a 1-step grid can't amortize launch/pipeline overhead.
    if total < min_rows_for_kernel:
        pos = position_ids.astype(jnp.float32)
        freqs = pos[..., None] * inv_freq[None, None, :]
        emb = jnp.concatenate([freqs, freqs], axis=-1)
        return jnp.cos(emb).astype(out_dtype), jnp.sin(emb).astype(out_dtype)

    # Lane-dense store strategy (see kernel): duplicate inv_freq to full width
    # only when half is not a multiple of 128 lanes.
    if half % 128 == 0:
        invf_arr = inv_freq.reshape(1, half)
        invf_width = half
    else:
        invf_arr = jnp.concatenate([inv_freq, inv_freq]).reshape(1, dim)
        invf_width = dim

    # Generation-aware row-tile cap: 2 outputs x 2 pipeline buffers of the out
    # tile plus ~2 full-width f32 temporaries per row, within ~1/4 of VMEM.
    out_bytes = jnp.dtype(out_dtype).itemsize
    try:
        vmem_cap = pltpu.get_tpu_info().vmem_capacity_bytes
    except Exception:  # pragma: no cover - conservative default (v7x per-TC)
        vmem_cap = 64 << 20
    vmem_budget = vmem_cap // 4
    bytes_per_row = 4 * dim * out_bytes + 4 * dim * 4
    max_tr = max(8, (vmem_budget // bytes_per_row) // 8 * 8)

    tr = min(row_tile, max_tr, total)
    if tr < total:
        tr = max(8, (tr // 8) * 8)            # sublane-aligned tile
    # Ensure >= 2 balanced grid steps so "parallel" can shard across v7x's
    # two TensorCores (no effect on single-TC v5e/v6e).
    if total >= 16 and pl.cdiv(total, tr) < 2:
        tr = max(8, ((total // 2 + 7) // 8) * 8)
    grid = (pl.cdiv(total, tr),)

    # Flatten to rows; positions sublane-major (rows, 1), kept int32 until the
    # in-kernel cast (no extra wrapper pass over HBM).
    pos_rows = position_ids.reshape(total, 1).astype(jnp.int32)

    cos, sin = pl.pallas_call(
        _rope_kernel,
        out_shape=(
            jax.ShapeDtypeStruct((total, dim), out_dtype),
            jax.ShapeDtypeStruct((total, dim), out_dtype),
        ),
        grid_spec=pltpu.PrefetchScalarGridSpec(
            num_scalar_prefetch=0,
            grid=grid,
            in_specs=[
                pl.BlockSpec((tr, 1), lambda r: (r, 0)),            # positions
                pl.BlockSpec((1, invf_width), lambda r: (0, 0)),     # inv_freq (resident)
            ],
            out_specs=[
                pl.BlockSpec((tr, dim), lambda r: (r, 0)),
                pl.BlockSpec((tr, dim), lambda r: (r, 0)),
            ],
        ),
        compiler_params=pltpu.CompilerParams(
            dimension_semantics=("parallel",),
        ),
    )(pos_rows, invf_arr)

    return cos.reshape(B, S, dim), sin.reshape(B, S, dim)


def _reference(x, position_ids, dim, base=10000.0):
    inv_freq = base ** (-jnp.arange(0, dim, 2, dtype=jnp.float32) / dim)
    pos = position_ids.astype(jnp.float32)                     # (B, S)
    freqs = pos[:, :, None] * inv_freq[None, None, :]          # (B, S, half)
    emb = jnp.concatenate([freqs, freqs], axis=-1)             # (B, S, dim)
    return jnp.cos(emb).astype(x.dtype), jnp.sin(emb).astype(x.dtype)


if __name__ == "__main__":
    key = jax.random.PRNGKey(0)

    # --- small module-like shape; force the Pallas path to exercise the kernel ---
    B, S, dim = 2, 8, 32
    x = jax.random.normal(key, (B, S, dim), dtype=jnp.float32)   # only dtype matters
    position_ids = jnp.broadcast_to(jnp.arange(S, dtype=jnp.int32), (B, S))
    position_ids = position_ids + jnp.arange(B, dtype=jnp.int32)[:, None]

    cos, sin = gemma_rotary_embedding(x, position_ids, dim, min_rows_for_kernel=0)
    cos, sin = jax.block_until_ready((cos, sin))
    cos_ref, sin_ref = _reference(x, position_ids, dim)
    assert cos.shape == (B, S, dim) and sin.shape == (B, S, dim)
    assert cos.dtype == x.dtype and sin.dtype == x.dtype
    assert jnp.allclose(cos, cos_ref, atol=1e-5, rtol=1e-5)
    assert jnp.allclose(sin, sin_ref, atol=1e-5, rtol=1e-5)

    # --- Gemma-like shape (dim=256 -> lane-aligned half path, multi-step grid) ---
    B2, S2, dim2 = 2, 640, 256
    x2 = jax.random.normal(jax.random.fold_in(key, 1), (B2, S2, dim2), dtype=jnp.float32)
    pos2 = jnp.broadcast_to(jnp.arange(S2, dtype=jnp.int32), (B2, S2))
    cos2, sin2 = gemma_rotary_embedding(x2, pos2, dim2)
    cos2, sin2 = jax.block_until_ready((cos2, sin2))
    cos2_ref, sin2_ref = _reference(x2, pos2, dim2)
    assert jnp.allclose(cos2, cos2_ref, atol=2e-5, rtol=2e-5)
    assert jnp.allclose(sin2, sin2_ref, atol=2e-5, rtol=2e-5)

    # --- tiny-shape pure-XLA fallback path (default dispatch) ---
    cos3, sin3 = gemma_rotary_embedding(x, position_ids, dim)   # total=16 < 256
    cos3, sin3 = jax.block_until_ready((cos3, sin3))
    assert jnp.allclose(cos3, cos_ref, atol=1e-5, rtol=1e-5)
    assert jnp.allclose(sin3, sin_ref, atol=1e-5, rtol=1e-5)

    print("KERNEL_OK")
</pallas_src>

<mosaic_0001>
module attributes {stable_mosaic.version = 11 : i64} {
  func.func @_rope_kernel(%arg0: i32, %arg1: memref<8x1xi32, #tpu.memory_space<vmem>>, %arg2: memref<1x32xf32, #tpu.memory_space<vmem>>, %arg3: memref<8x32xf32, #tpu.memory_space<vmem>>, %arg4: memref<8x32xf32, #tpu.memory_space<vmem>>) attributes {dimension_semantics = [#tpu.dimension_semantics<parallel>], iteration_bounds = array<i64: 2>, scalar_prefetch = 0 : i64, scratch_operands = 0 : i64, tpu.core_type = #tpu.core_type<tc>, window_params = [{transform_indices = @transform_0, window_bounds = array<i64: 8, 1>}, {pipeline_mode = #tpu.pipeline_mode<synchronous>, transform_indices = @transform_1, window_bounds = array<i64: 1, 32>}, {transform_indices = @transform_2, window_bounds = array<i64: 8, 32>}, {transform_indices = @transform_3, window_bounds = array<i64: 8, 32>}]} {
    %c0 = arith.constant 0 : index
    %c0_0 = arith.constant 0 : index
    %0 = vector.load %arg1[%c0, %c0_0] : memref<8x1xi32, #tpu.memory_space<vmem>>, vector<8x1xi32>
    %1 = arith.sitofp %0 : vector<8x1xi32> to vector<8x1xf32>
    %c0_1 = arith.constant 0 : index
    %c0_2 = arith.constant 0 : index
    %2 = vector.load %arg2[%c0_1, %c0_2] : memref<1x32xf32, #tpu.memory_space<vmem>>, vector<1x32xf32>
    %3 = vector.broadcast %1 : vector<8x1xf32> to vector<8x32xf32>
    %4 = vector.broadcast %2 : vector<1x32xf32> to vector<8x32xf32>
    %5 = arith.mulf %3, %4 : vector<8x32xf32>
    %cst = arith.constant 0.636619746 : f32
    %6 = vector.broadcast %cst : f32 to vector<8x32xf32>
    %7 = arith.mulf %5, %6 : vector<8x32xf32>
    %cst_3 = arith.constant 5.000000e-01 : f32
    %8 = vector.broadcast %cst_3 : f32 to vector<8x32xf32>
    %9 = arith.addf %7, %8 : vector<8x32xf32>
    %10 = math.floor %9 : vector<8x32xf32>
    %cst_4 = arith.constant 1.5703125 : f32
    %11 = vector.broadcast %cst_4 : f32 to vector<8x32xf32>
    %12 = arith.mulf %10, %11 : vector<8x32xf32>
    %13 = arith.subf %5, %12 : vector<8x32xf32>
    %cst_5 = arith.constant 4.83751297E-4 : f32
    %14 = vector.broadcast %cst_5 : f32 to vector<8x32xf32>
    %15 = arith.mulf %10, %14 : vector<8x32xf32>
    %16 = arith.subf %13, %15 : vector<8x32xf32>
    %cst_6 = arith.constant 7.549790e-08 : f32
    %17 = vector.broadcast %cst_6 : f32 to vector<8x32xf32>
    %18 = arith.mulf %10, %17 : vector<8x32xf32>
    %19 = arith.subf %16, %18 : vector<8x32xf32>
    %20 = arith.mulf %19, %19 : vector<8x32xf32>
    %21 = arith.mulf %19, %20 : vector<8x32xf32>
    %cst_7 = arith.constant -1.95152956E-4 : f32
    %22 = vector.broadcast %cst_7 : f32 to vector<8x32xf32>
    %23 = arith.mulf %20, %22 : vector<8x32xf32>
    %cst_8 = arith.constant 0.00833216123 : f32
    %24 = vector.broadcast %cst_8 : f32 to vector<8x32xf32>
    %25 = arith.addf %24, %23 : vector<8x32xf32>
    %26 = arith.mulf %20, %25 : vector<8x32xf32>
    %cst_9 = arith.constant -0.166666552 : f32
    %27 = vector.broadcast %cst_9 : f32 to vector<8x32xf32>
    %28 = arith.addf %27, %26 : vector<8x32xf32>
    %29 = arith.mulf %21, %28 : vector<8x32xf32>
    %30 = arith.addf %19, %29 : vector<8x32xf32>
    %cst_10 = arith.constant 5.000000e-01 : f32
    %31 = vector.broadcast %cst_10 : f32 to vector<8x32xf32>
    %32 = arith.mulf %31, %20 : vector<8x32xf32>
    %cst_11 = arith.constant 1.000000e+00 : f32
    %33 = vector.broadcast %cst_11 : f32 to vector<8x32xf32>
    %34 = arith.subf %33, %32 : vector<8x32xf32>
    %35 = arith.mulf %20, %20 : vector<8x32xf32>
    %cst_12 = arith.constant 2.44331568E-5 : f32
    %36 = vector.broadcast %cst_12 : f32 to vector<8x32xf32>
    %37 = arith.mulf %20, %36 : vector<8x32xf32>
    %cst_13 = arith.constant -0.00138873165 : f32
    %38 = vector.broadcast %cst_13 : f32 to vector<8x32xf32>
    %39 = arith.addf %38, %37 : vector<8x32xf32>
    %40 = arith.mulf %20, %39 : vector<8x32xf32>
    %cst_14 = arith.constant 0.0416666456 : f32
    %41 = vector.broadcast %cst_14 : f32 to vector<8x32xf32>
    %42 = arith.addf %41, %40 : vector<8x32xf32>
    %43 = arith.mulf %35, %42 : vector<8x32xf32>
    %44 = arith.addf %34, %43 : vector<8x32xf32>
    %45 = arith.fptosi %10 : vector<8x32xf32> to vector<8x32xi32>
    %c3_i32 = arith.constant 3 : i32
    %46 = vector.broadcast %c3_i32 : i32 to vector<8x32xi32>
    %47 = arith.andi %45, %46 : vector<8x32xi32>
    %c1_i32 = arith.constant 1 : i32
    %48 = vector.broadcast %c1_i32 : i32 to vector<8x32xi32>
    %49 = arith.andi %47, %48 : vector<8x32xi32>
    %c0_i32 = arith.constant 0 : i32
    %50 = vector.broadcast %c0_i32 : i32 to vector<8x32xi32>
    %51 = arith.cmpi ne, %49, %50 : vector<8x32xi32>
    %52 = arith.select %51, %44, %30 : vector<8x32xi1>, vector<8x32xf32>
    %53 = arith.select %51, %30, %44 : vector<8x32xi1>, vector<8x32xf32>
    %c2_i32 = arith.constant 2 : i32
    %54 = vector.broadcast %c2_i32 : i32 to vector<8x32xi32>
    %55 = arith.andi %47, %54 : vector<8x32xi32>
    %c0_i32_15 = arith.constant 0 : i32
    %56 = vector.broadcast %c0_i32_15 : i32 to vector<8x32xi32>
    %57 = arith.cmpi ne, %55, %56 : vector<8x32xi32>
    %c1_i32_16 = arith.constant 1 : i32
    %58 = vector.broadcast %c1_i32_16 : i32 to vector<8x32xi32>
    %59 = arith.addi %47, %58 : vector<8x32xi32>
    %c2_i32_17 = arith.constant 2 : i32
    %60 = vector.broadcast %c2_i32_17 : i32 to vector<8x32xi32>
    %61 = arith.andi %59, %60 : vector<8x32xi32>
    %c0_i32_18 = arith.constant 0 : i32
    %62 = vector.broadcast %c0_i32_18 : i32 to vector<8x32xi32>
    %63 = arith.cmpi ne, %61, %62 : vector<8x32xi32>
    %cst_19 = arith.constant 0.000000e+00 : f32
    %64 = vector.broadcast %cst_19 : f32 to vector<8x32xf32>
    %65 = arith.subf %64, %52 : vector<8x32xf32>
    %66 = arith.select %57, %65, %52 : vector<8x32xi1>, vector<8x32xf32>
    %cst_20 = arith.constant 0.000000e+00 : f32
    %67 = vector.broadcast %cst_20 : f32 to vector<8x32xf32>
    %68 = arith.subf %67, %53 : vector<8x32xf32>
    %69 = arith.select %63, %68, %53 : vector<8x32xi1>, vector<8x32xf32>
    %c0_21 = arith.constant 0 : index
    %c0_22 = arith.constant 0 : index
    %70 = vector.load %arg3[%c0_21, %c0_22] : memref<8x32xf32, #tpu.memory_space<vmem>>, vector<8x32xf32>
    tpu.vector_store %arg3[%c0_21, %c0_22], %69 {strides = array<i32>} : memref<8x32xf32, #tpu.memory_space<vmem>>, vector<8x32xf32>,
    %c0_23 = arith.constant 0 : index
    %c0_24 = arith.constant 0 : index
    %71 = vector.load %arg4[%c0_23, %c0_24] : memref<8x32xf32, #tpu.memory_space<vmem>>, vector<8x32xf32>
    tpu.vector_store %arg4[%c0_23, %c0_24], %66 {strides = array<i32>} : memref<8x32xf32, #tpu.memory_space<vmem>>, vector<8x32xf32>,
    return
  }
  func.func @transform_0(%arg0: i32) -> (i32, i32) {
    %c0_i32 = arith.constant 0 : i32
    %c0_i32_0 = arith.constant 0 : i32
    return %arg0, %c0_i32 : i32, i32
  }
  func.func @transform_1(%arg0: i32) -> (i32, i32) {
    %c0_i32 = arith.constant 0 : i32
    %c0_i32_0 = arith.constant 0 : i32
    %c0_i32_1 = arith.constant 0 : i32
    return %c0_i32, %c0_i32_0 : i32, i32
  }
  func.func @transform_2(%arg0: i32) -> (i32, i32) {
    %c0_i32 = arith.constant 0 : i32
    %c0_i32_0 = arith.constant 0 : i32
    return %arg0, %c0_i32 : i32, i32
  }
  func.func @transform_3(%arg0: i32) -> (i32, i32) {
    %c0_i32 = arith.constant 0 : i32
    %c0_i32_0 = arith.constant 0 : i32
    return %arg0, %c0_i32 : i32, i32
  }
}

</mosaic_0001>

<llo_original>
// kernel: tpu_custom_call.1
$region0: #{tpu_custom_call.1}
  #allocation0 [shape = 'u32[]', space=smem, size = 0x4, offset = 0x4, fixed_abs, tag = 'smem constant byte address 0x4 - core index']
  #allocation1 [shape = 'u32[144,128]{1,0:T(1,128)}', space=vmem, size = 0x12000, scoped, tag = 'internal scratch']
  %s0 = inlined_call_operand.vmem [shape: s32[16,1], index: 0, kind: input, shape index: {}]
  %s1 = inlined_call_operand.vmem [shape: f32[1,32], index: 1, kind: input, shape index: {}]
  %s2 = inlined_call_operand.hbm [shape: f32[16,32], index: 2, kind: output, shape index: {0}]
  %s3 = inlined_call_operand.hbm [shape: f32[16,32], index: 3, kind: output, shape index: {1}]
  %4 = xla_tuple %s2, %s3
  %s5 = sld [smem:[#allocation0]]
  $region49: #{tpu_custom_call.1} parent=0
    _
  %s7 = ssub.s32 1, %s5
  %s8 = scalar_select 0, %s7, %s5
  $region1: #{tpu_custom_call.1} parent=0
    #allocation2 [shape = 'u8[8192]{0}', space=vmem, size = 0x2000, scoped, tag = 'output window, operand 0']
    #allocation3 [shape = 's32[2]{0}', space=sflag, size = 0x8, scoped, tag = 'scoped memory for tpu_custom_call.1']
    #allocation4 [shape = 'u8[8192]{0}', space=vmem, size = 0x2000, scoped, tag = 'output window, operand 1']
    #allocation5 [shape = 's32[2]{0}', space=sflag, size = 0x8, scoped, tag = 'scoped memory for tpu_custom_call.1']
    %9 = vsyncpa [#allocation3], 0
    %s10 = scalar_lea.sflag [#allocation3], 1
    %11 = vsyncpa %s10, 0
    %12 = vsyncpa [#allocation5], 0
    %s13 = scalar_lea.sflag [#allocation5], 1
    %14 = vsyncpa %s13, 0
    loop: start=0, step=1, limit=4
    $region2: #{tpu_custom_call.1} parent=1 // loop_pre_header
      _
    $region3: #{tpu_custom_call.1} parent=1 // loop_header
      %s16 = sphi 0, %s20
      %p17 = scmp.ge.s32.totalorder %s16, 4
      %s26 = sphi 0, %s28
      %s29 = sphi 0, %s26
      %s30 = sphi 0, %s29
      %s46 = sphi 0, %s30
      %s50 = sphi 0, %s50
      %s52 = sphi 0, %s50
      %s53 = sphi 0, %s52
      %s67 = sphi 0, %s53
      %s73 = sphi 0, %s75
      %s76 = sphi 0, %s73
      %s77 = sphi 0, %s76
      %s93 = sphi 0, %s77
      %s99 = sphi 0, %s101
      %s102 = sphi 0, %s99
      %s103 = sphi 0, %s102
      %s119 = sphi 0, %s103
    $region4: #{tpu_custom_call.1} parent=1 // loop_header_branch
      %19 = sbr.rel (%p17) target = $region8
    $region5: #{tpu_custom_call.1} parent=1 // loop_body
      %s21 = ssub.s32 %s16, 1
      %s22 = ssub.s32 %s16, 2
      %s23 = sadd.s32 %s16, 1
      %s24 = ssub.s32 %s16, %s23
      %p25 = scmp.eq.s32.totalorder %s24, 0
      %s27 = sadd.s32 %s26, 1
      %s28 = scalar_select %p25, %s26, %s27
      %p31 = pneg %p25
      %p32 = scmp.eq.s32.totalorder %s16, 1
      %p33 = por %p31, %p32
      %p34 = scmp.ne.s32.totalorder %s26, %s29
      %p35 = scmp.eq.s32.totalorder %s16, 0
      %p36 = por %p34, %p35
      %p37 = scmp.ne.s32.totalorder %s26, %s29
      %p38 = scmp.eq.s32.totalorder %s21, 1
      %p39 = por %p37, %p38
      %p40 = scmp.ne.s32.totalorder %s29, %s30
      %p41 = scmp.eq.s32.totalorder %s21, 0
      %p42 = por %p40, %p41
      %p43 = scmp.ne.s32.totalorder %s29, %s30
      %p44 = scmp.eq.s32.totalorder %s22, 1
      %p45 = por %p43, %p44
      %p47 = scmp.ne.s32.totalorder %s30, %s46
      %p48 = scmp.eq.s32.totalorder %s22, 0
      %p49 = por %p47, %p48
      %s51 = sadd.s32 %s50, 1
      %p54 = scmp.eq.s32.totalorder %s16, 1
      %p55 = scmp.ne.s32.totalorder %s50, %s52
      %p56 = scmp.eq.s32.totalorder %s16, 0
      %p57 = por %p55, %p56
      %p58 = scmp.ne.s32.totalorder %s50, %s52
      %p59 = scmp.eq.s32.totalorder %s21, 1
      %p60 = por %p58, %p59
      %p61 = scmp.ne.s32.totalorder %s52, %s53
      %p62 = scmp.eq.s32.totalorder %s21, 0
      %p63 = por %p61, %p62
      %p64 = scmp.ne.s32.totalorder %s52, %s53
      %p65 = scmp.eq.s32.totalorder %s22, 1
      %p66 = por %p64, %p65
      %p68 = scmp.ne.s32.totalorder %s53, %s67
      %p69 = scmp.eq.s32.totalorder %s22, 0
      %p70 = por %p68, %p69
      %s71 = ssub.s32 %s16, %s23
      %p72 = scmp.eq.s32.totalorder %s71, 0
      %s74 = sadd.s32 %s73, 1
      %s75 = scalar_select %p72, %s73, %s74
      %p78 = pneg %p72
      %p79 = scmp.eq.s32.totalorder %s16, 1
      %p80 = por %p78, %p79
      %p81 = scmp.ne.s32.totalorder %s73, %s76
      %p82 = scmp.eq.s32.totalorder %s16, 0
      %p83 = por %p81, %p82
      %p84 = scmp.ne.s32.totalorder %s73, %s76
      %p85 = scmp.eq.s32.totalorder %s21, 1
      %p86 = por %p84, %p85
      %p87 = scmp.ne.s32.totalorder %s76, %s77
      %p88 = scmp.eq.s32.totalorder %s21, 0
      %p89 = por %p87, %p88
      %p90 = scmp.ne.s32.totalorder %s76, %s77
      %p91 = scmp.eq.s32.totalorder %s22, 1
      %p92 = por %p90, %p91
      %p94 = scmp.ne.s32.totalorder %s77, %s93
      %p95 = scmp.eq.s32.totalorder %s22, 0
      %p96 = por %p94, %p95
      %s97 = ssub.s32 %s16, %s23
      %p98 = scmp.eq.s32.totalorder %s97, 0
      %s100 = sadd.s32 %s99, 1
      %s101 = scalar_select %p98, %s99, %s100
      %p104 = pneg %p98
      %p105 = scmp.eq.s32.totalorder %s16, 1
      %p106 = por %p104, %p105
      %p107 = scmp.ne.s32.totalorder %s99, %s102
      %p108 = scmp.eq.s32.totalorder %s16, 0
      %p109 = por %p107, %p108
      %p110 = scmp.ne.s32.totalorder %s99, %s102
      %p111 = scmp.eq.s32.totalorder %s21, 1
      %p112 = por %p110, %p111
      %p113 = scmp.ne.s32.totalorder %s102, %s103
      %p114 = scmp.eq.s32.totalorder %s21, 0
      %p115 = por %p113, %p114
      %p116 = scmp.ne.s32.totalorder %s102, %s103
      %p117 = scmp.eq.s32.totalorder %s22, 1
      %p118 = por %p116, %p117
      %p120 = scmp.ne.s32.totalorder %s103, %s119
      %p121 = scmp.eq.s32.totalorder %s22, 0
      %p122 = por %p120, %p121
      %p123 = scmp.le.s32.totalorder 1, %s16
      %p124 = scmp.lt.s32.totalorder %s16, 3
      %p125 = pnand %p123, %p124
      %p126 = pneg %p125
      // Predicated region
      $region9: #{tpu_custom_call.1} parent=5 // pred_check
        _
      $region10: #{tpu_custom_call.1} parent=5 // pred_check_branch
        %128 = sbr.rel (%p125) target = $region12
      $region11: #{tpu_custom_call.1} parent=5 // pred_region
        %s129 = ssub.s32 %s16, 1
        // Predicated region
        $region13: #{tpu_custom_call.1} parent=11 // pred_check
          %p130 = pneg %p63
        $region14: #{tpu_custom_call.1} parent=11 // pred_check_branch
          %132 = sbr.rel (%p130) target = $region16
        $region15: #{tpu_custom_call.1} parent=11 // pred_region
          _
        $region16: #{tpu_custom_call.1} parent=11 // pred_fallthru
          _
      $region12: #{tpu_custom_call.1} parent=5 // pred_fallthru
        _
      %p133 = scmp.lt.s32.totalorder %s16, 2
      // Predicated region
      $region17: #{tpu_custom_call.1} parent=5 // pred_check
        %p134 = pneg %p133
      $region18: #{tpu_custom_call.1} parent=5 // pred_check_branch
        %136 = sbr.rel (%p134) target = $region20
      $region19: #{tpu_custom_call.1} parent=5 // pred_region
        // Predicated region
        $region21: #{tpu_custom_call.1} parent=19 // pred_check
          %p137 = pneg %p36
        $region22: #{tpu_custom_call.1} parent=19 // pred_check_branch
          %139 = sbr.rel (%p137) target = $region24
        $region23: #{tpu_custom_call.1} parent=19 // pred_region
          %p140 = scmp.lt.s32.totalorder %s16, 1
          %s141 = scalar_select %p140, %s16, 1
          %s142 = smul.addr %s141, 8
          %s143 = scalar_lea.vmem %s0, %s142
        $region24: #{tpu_custom_call.1} parent=19 // pred_fallthru
          _
      $region20: #{tpu_custom_call.1} parent=5 // pred_fallthru
        _
      %p144 = scmp.le.s32.totalorder 1, %s16
      %p145 = scmp.lt.s32.totalorder %s16, 3
      %p146 = pnand %p144, %p145
      %p147 = pneg %p146
      // Predicated region
      $region25: #{tpu_custom_call.1} parent=5 // pred_check
        _
      $region26: #{tpu_custom_call.1} parent=5 // pred_check_branch
        %149 = sbr.rel (%p146) target = $region28
      $region27: #{tpu_custom_call.1} parent=5 // pred_region
        %s150 = ssub.s32 %s16, 1
        %p151 = scmp.lt.s32.totalorder %s21, 1
        %s152 = scalar_select %p151, %s21, 1
        %s153 = smul.addr %s152, 8
        %s154 = scalar_lea.vmem %s0, %s153
        %p155 = pneg %p42
        %p156 = pneg %p39
        %p157 = pneg %p63
        %p158 = pneg %p60
        %p159 = pneg %p89
        %p160 = pneg %p86
        %s161 = sand.u32 %s76, 1
        %s162 = scalar_lea.sflag [#allocation3], %s161
        %s163 = sand.u32 %s76, 1
        %s164 = smul.addr %s163, 8
        %s165 = scalar_lea.vmem [#allocation2], %s164
        %p166 = pneg %p115
        %p167 = pneg %p112
        %s168 = sand.u32 %s102, 1
        %s169 = scalar_lea.sflag [#allocation5], %s168
        %s170 = sand.u32 %s102, 1
        %s171 = smul.addr %s170, 8
        %s172 = scalar_lea.vmem [#allocation4], %s171
        %p173 = scmp.lt.s32.totalorder %s21, 1
        %s174 = scalar_select %p173, %s21, 1
        %s175 = smul.addr %s174, 8
        %s176 = scalar_lea.vmem %s0, %s175
        %v177 = vld [vmem:[%s176] sm:$0xff]
        %v178 = vcvt.s32.f32 %v177
        %v179 = vld [vmem:[%s1] sm:$0x1]
        %181 = vset.pattern.permute.xlu0 0
        %182 = vperm.xlu0 %181, %v178
        %v183 = vpop.permute.xlu0 %182
        %v186 = vlaneseq
        %v187 = vshrl.u32 %v186, 7
        %v188 = vsub.s32 0, %v187
        %v189 = vrot.slane %v179, %v188
        %v191 = vmul.f32 %v183, %v189
        %v192 = vmul.f32 %v191, 0.63661975
        %v193 = vadd.f32 %v192, 0.5
        %v194 = vfloor.f32 %v193
        %v195 = vmul.f32 %v194, 1.5703125
        %v196 = vsub.f32 %v191, %v195
        %v197 = vmul.f32 %v194, 0.0004837513
        %v198 = vsub.f32 %v196, %v197
        %v199 = vmul.f32 %v194, 7.54979e-08
        %v200 = vsub.f32 %v198, %v199
        %v201 = vmul.f32 %v200, %v200
        %v202 = vmul.f32 %v200, %v201
        %v203 = vmul.f32 %v201, -0.00019515296
        %v204 = vadd.f32 %v203, 0.008332161
        %v205 = vmul.f32 %v201, %v204
        %v206 = vadd.f32 %v205, -0.16666655
        %v207 = vmul.f32 %v202, %v206
        %v208 = vadd.f32 %v200, %v207
        %v209 = vmul.f32 %v201, 0.5
        %v210 = vsub.f32 1.0, %v209
        %v211 = vmul.f32 %v201, %v201
        %v212 = vmul.f32 %v201, 2.4433157e-05
        %v213 = vadd.f32 %v212, -0.0013887316
        %v214 = vmul.f32 %v201, %v213
        %v215 = vadd.f32 %v214, 0.041666646
        %v216 = vmul.f32 %v211, %v215
        %v217 = vadd.f32 %v210, %v216
        %v218 = vcvt.f32.s32.to.zero.pseudo %v194
        %v219 = vand.u32 %v218, 3
        %v220 = vand.u32 %v219, 1
        %vm221 = vcmp.ne.s32.totalorder %v220, 0
        %v222 = vsel %vm221, %v217, %v208
        %v223 = vsel %vm221, %v208, %v217
        %v224 = vand.u32 %v219, 2
        %vm225 = vcmp.ne.s32.totalorder %v224, 0
        %v226 = vadd.s32 %v219, 1
        %v227 = vand.u32 %v226, 2
        %vm228 = vcmp.ne.s32.totalorder %v227, 0
        %v229 = vsub.f32 0.0, %v222
        %v230 = vsel %vm225, %v229, %v222
        %v231 = vsub.f32 0.0, %v223
        %v232 = vsel %vm228, %v231, %v223
        %vm233 = vcmask 261120
        %234 = vst.msk [vmem:[%s165] sm:$0xff] %vm233, %v232
        %235 = vst.msk [vmem:[%s172] sm:$0xff] %vm233, %v230
        %s236 = sand.u32 %s76, 1
        %s237 = scalar_lea.sflag [#allocation3], %s236
        %s238 = sand.u32 %s76, 1
        %s239 = smul.addr %s238, 8
        %s240 = scalar_lea.vmem [#allocation2], %s239
        %s241 = sand.u32 %s102, 1
        %s242 = scalar_lea.sflag [#allocation5], %s241
        %s243 = sand.u32 %s102, 1
        %s244 = smul.addr %s243, 8
        %s245 = scalar_lea.vmem [#allocation4], %s244
        // Predicated region
        $region29: #{tpu_custom_call.1} parent=27 // pred_check
          %p246 = pneg %p86
        $region30: #{tpu_custom_call.1} parent=27 // pred_check_branch
          %248 = sbr.rel (%p246) target = $region32
        $region31: #{tpu_custom_call.1} parent=27 // pred_region
          %s250 = ssub.s32 128, 128
          %251 = vsyncadd %s237, %s250
          %s252 = smul.addr %s21, 128
          %s253 = scalar_lea.hbm %s2, %s252
          %s255 = sshll.u32 %s240, 4
          %s256 = int_to_ptr.vmem [resolvable:$true] %s255
          %258 = dma.vmem_to_hbm [thread:$0]  %s256, 128, %s253, %s237
        $region32: #{tpu_custom_call.1} parent=27 // pred_fallthru
          _
        // Predicated region
        $region33: #{tpu_custom_call.1} parent=27 // pred_check
          %p259 = pneg %p112
        $region34: #{tpu_custom_call.1} parent=27 // pred_check_branch
          %261 = sbr.rel (%p259) target = $region36
        $region35: #{tpu_custom_call.1} parent=27 // pred_region
          %s263 = ssub.s32 128, 128
          %264 = vsyncadd %s242, %s263
          %s265 = smul.addr %s21, 128
          %s266 = scalar_lea.hbm %s3, %s265
          %s268 = sshll.u32 %s245, 4
          %s269 = int_to_ptr.vmem [resolvable:$true] %s268
          %271 = dma.vmem_to_hbm [thread:$0]  %s269, 128, %s266, %s242
        $region36: #{tpu_custom_call.1} parent=27 // pred_fallthru
          _
      $region28: #{tpu_custom_call.1} parent=5 // pred_fallthru
        _
      %p272 = scmp.le.s32.totalorder 2, %s16
      // Predicated region
      $region37: #{tpu_custom_call.1} parent=5 // pred_check
        %p273 = pneg %p272
      $region38: #{tpu_custom_call.1} parent=5 // pred_check_branch
        %275 = sbr.rel (%p273) target = $region40
      $region39: #{tpu_custom_call.1} parent=5 // pred_region
        %s276 = ssub.s32 %s16, 2
        // Predicated region
        $region41: #{tpu_custom_call.1} parent=39 // pred_check
          %p277 = pneg %p92
        $region42: #{tpu_custom_call.1} parent=39 // pred_check_branch
          %279 = sbr.rel (%p277) target = $region44
        $region43: #{tpu_custom_call.1} parent=39 // pred_region
          %s280 = sand.u32 %s77, 1
          %s281 = scalar_lea.sflag [#allocation3], %s280
          %s282 = sand.u32 %s77, 1
          %s283 = smul.addr %s282, 8
          %s284 = scalar_lea.vmem [#allocation2], %s283
          %285 = dma.done %s281, 128
        $region44: #{tpu_custom_call.1} parent=39 // pred_fallthru
          _
        // Predicated region
        $region45: #{tpu_custom_call.1} parent=39 // pred_check
          %p286 = pneg %p118
        $region46: #{tpu_custom_call.1} parent=39 // pred_check_branch
          %288 = sbr.rel (%p286) target = $region48
        $region47: #{tpu_custom_call.1} parent=39 // pred_region
          %s289 = sand.u32 %s103, 1
          %s290 = scalar_lea.sflag [#allocation5], %s289
          %s291 = sand.u32 %s103, 1
          %s292 = smul.addr %s291, 8
          %s293 = scalar_lea.vmem [#allocation4], %s292
          %294 = dma.done %s290, 128
        $region48: #{tpu_custom_call.1} parent=39 // pred_fallthru
          _
      $region40: #{tpu_custom_call.1} parent=5 // pred_fallthru
        _
    $region6: #{tpu_custom_call.1} parent=1 // loop_footer
      %s20 = sadd.s32 1, %s16
    $region7: #{tpu_custom_call.1} parent=1 // loop_footer_branch
      %15 = sbr.rel target = $region3
    $region8: #{tpu_custom_call.1} parent=1 // loop_exit
      _
    %295 = vsyncpa [#allocation3], 1
    %s296 = scalar_lea.sflag [#allocation3], 1
    %297 = vsyncpa %s296, 1
    %298 = vsyncpa [#allocation5], 1
    %s299 = scalar_lea.sflag [#allocation5], 1
    %300 = vsyncpa %s299, 1

</llo_original>
